<compile_context>
chip_gen: v5e
topology: v5e:2x2
jax: 0.10.0
libtpu: 0.0.40
codegen_flags: <defaults>
</compile_context>

<pallas_src>
import functools

import numpy as np
import jax
import jax.numpy as jnp
from jax import lax
from jax.experimental import pallas as pl
from jax.experimental.pallas import tpu as pltpu

_MIB = 1024 * 1024


def _round_up(x, m):
    return (x + m - 1) // m * m


def _cdiv(a, b):
    return (a + b - 1) // b


def _vmem_capacity_bytes():
    """Per-core VMEM capacity; conservative (v7x-safe) fallback if query fails."""
    try:
        return int(pltpu.get_tpu_info().vmem_capacity_bytes)
    except Exception:
        return 64 * _MIB


def _layer_norm_f32(y, gamma, beta, dim_m, eps):
    """f32 LayerNorm over the last axis; lanes >= dim_m (padding) are masked out."""
    dim_m_pad = y.shape[-1]
    mask = None
    if dim_m_pad != dim_m:
        lane = lax.broadcasted_iota(jnp.int32, y.shape, y.ndim - 1)
        mask = lane < dim_m
        y = jnp.where(mask, y, 0.0)
    inv_n = 1.0 / dim_m
    mean = jnp.sum(y, axis=-1, keepdims=True) * inv_n
    centered = y - mean
    if mask is not None:
        centered = jnp.where(mask, centered, 0.0)
    var = jnp.sum(centered * centered, axis=-1, keepdims=True) * inv_n
    return centered * lax.rsqrt(var + eps) * gamma + beta


def _position_wise_kernel(x_ref, w1_ref, b1_ref, w2_ref, b2_ref,
                          gamma_ref, beta_ref, o_ref, *scratch,
                          dim_m, eps, mm_dtype, num_k, cast_x):
    """out = LayerNorm(relu(x @ W1 + b1) @ W2 + b2 + x).  Grid = (row_tiles, num_k)."""
    # TODO(synk): dropout omitted (identity in eval / inference mode).
    if num_k == 1:
        # Weights-resident fast path: single fused pass, no scratch needed.
        x = x_ref[...]
        h = jnp.dot(x.astype(mm_dtype), w1_ref[...],
                    preferred_element_type=jnp.float32)
        h = jnp.maximum(h + b1_ref[...], 0.0)
        y = jnp.dot(h.astype(mm_dtype), w2_ref[...],
                    preferred_element_type=jnp.float32)
        y = y + b2_ref[...] + x.astype(jnp.float32)
        o_ref[...] = _layer_norm_f32(y, gamma_ref[...], beta_ref[...],
                                     dim_m, eps).astype(o_ref.dtype)
        return

    # dim_i-chunked path: accumulate partial Linear2 products over grid axis 1.
    k = pl.program_id(1)
    acc_ref = scratch[0]
    x_mm_ref = scratch[1] if cast_x else None

    @pl.when(k == 0)
    def _init():
        acc_ref[...] = jnp.zeros_like(acc_ref)
        if cast_x:   # hoist the x -> mm_dtype cast out of the k loop (once per row tile)
            x_mm_ref[...] = x_ref[...].astype(mm_dtype)

    x_mm = x_mm_ref[...] if cast_x else x_ref[...]
    h = jnp.dot(x_mm, w1_ref[...], preferred_element_type=jnp.float32)
    h = jnp.maximum(h + b1_ref[...], 0.0)
    acc_ref[...] += jnp.dot(h.astype(mm_dtype), w2_ref[...],
                            preferred_element_type=jnp.float32)

    @pl.when(k == pl.num_programs(1) - 1)
    def _finalize():
        y = acc_ref[...] + b2_ref[...] + x_ref[...].astype(jnp.float32)
        o_ref[...] = _layer_norm_f32(y, gamma_ref[...], beta_ref[...],
                                     dim_m, eps).astype(o_ref.dtype)


def position_wise(x, w1, b1, w2, b2, gamma, beta, *,
                  tm=256, tk_max=1024, matmul_dtype=jnp.bfloat16, eps=1e-12,
                  _force_chunked=False):
    """PositionWise forward.  x: (batch, *, dim_m).  Returns x's shape / dtype."""
    orig_shape = x.shape
    dim_m = orig_shape[-1]
    dim_i = w1.shape[1]
    assert w1.shape == (dim_m, dim_i) and w2.shape == (dim_i, dim_m)
    assert b1.shape == (dim_i,) and b2.shape == (dim_m,)
    assert gamma.shape == (dim_m,) and beta.shape == (dim_m,)

    x_dtype = np.dtype(x.dtype)
    mm_dtype = np.dtype(matmul_dtype) if matmul_dtype is not None else x_dtype
    xb, mb = x_dtype.itemsize, mm_dtype.itemsize

    x2d = x.reshape(-1, dim_m)
    rows = x2d.shape[0]

    dim_m_pad = _round_up(dim_m, 128)          # lane-dense (unmasked vst) features
    dim_i_pad = _round_up(dim_i, 128)

    # ---- per-generation VMEM budget (v7x: 64 MiB/core, v5e/v6e: 128 MiB) ----
    vmem_budget = (_vmem_capacity_bytes() * 7) // 8

    # ---- row tiling: balanced tiles, >= 2 tiles when possible (v7x megacore) ----
    def _plan_rows(tm_target):
        tm_e = max(8, min(_round_up(tm_target, 8), _round_up(rows, 8)))
        n_tiles = _cdiv(rows, tm_e)
        if n_tiles == 1 and rows > 8:
            n_tiles = 2
        tm_e = _round_up(_cdiv(rows, n_tiles), 8)      # minimal row padding
        return tm_e, n_tiles, tm_e * n_tiles

    def _weight_bytes(tk_e, buffers):
        # W1 (dim_m_pad x tk) + W2 (tk x dim_m_pad) + b1 (padded to 8 sublanes, f32)
        return buffers * (2 * dim_m_pad * tk_e * mb + 8 * tk_e * 4)

    def _act_bytes(tm_e, tk_e, num_k_e, cast):
        b = 2 * tm_e * dim_m_pad * xb           # x tile   (double buffered)
        b += 2 * tm_e * dim_m_pad * xb          # out tile (double buffered)
        b += 3 * 2 * 8 * dim_m_pad * 4          # b2 / gamma / beta
        b += tm_e * tk_e * (4 + mb)             # h intermediate (+ cast copy)
        b += tm_e * dim_m_pad * 4               # LayerNorm temporaries
        if num_k_e > 1:
            b += tm_e * dim_m_pad * 4           # f32 accumulator scratch
            if cast:
                b += tm_e * dim_m_pad * mb      # hoisted x-cast scratch
        return b

    plan = None
    if not _force_chunked:
        # 1) weights-resident candidate: W1/W2 DMA'd from HBM exactly once.
        tm_e, ntr, rp = _plan_rows(tm)
        act = _act_bytes(tm_e, dim_i_pad, 1, False)
        if _weight_bytes(dim_i_pad, 2) + act <= vmem_budget:
            plan = dict(num_k=1, tk=dim_i_pad, tm_eff=tm_e, n_row_tiles=ntr,
                        rows_pad=rp, cast_x=False, single_buf_w=False)
        elif (hasattr(pl, "Buffered")
              and _weight_bytes(dim_i_pad, 1) + act <= vmem_budget):
            plan = dict(num_k=1, tk=dim_i_pad, tm_eff=tm_e, n_row_tiles=ntr,
                        rows_pad=rp, cast_x=False, single_buf_w=True)

    if plan is None:
        # 2) dim_i-chunked schedule: streamed-weight intensity ~ tm FLOPs/byte,
        #    so use big row tiles; tk (nearly) divides dim_i_pad (no over-pad).
        tm_target = max(tm, 768)
        tk_cap = max(128, min(_round_up(tk_max, 128), dim_i_pad))
        while plan is None:
            num_k = _cdiv(dim_i_pad, tk_cap)
            tk = _round_up(_cdiv(dim_i_pad, num_k), 128)
            cast = (mm_dtype != x_dtype) and num_k > 1
            tm_e, ntr, rp = _plan_rows(tm_target)
            while (tm_e > 8
                   and _weight_bytes(tk, 2) + _act_bytes(tm_e, tk, num_k, cast)
                   > vmem_budget):
                tm_e, ntr, rp = _plan_rows(max(8, tm_e // 2))
            fits = (_weight_bytes(tk, 2)
                    + _act_bytes(tm_e, tk, num_k, cast) <= vmem_budget)
            if fits or tk_cap <= 128:
                plan = dict(num_k=num_k, tk=tk, tm_eff=tm_e, n_row_tiles=ntr,
                            rows_pad=rp, cast_x=cast, single_buf_w=False)
            else:
                tk_cap = max(128, tk_cap // 2)

    num_k, tk = plan["num_k"], plan["tk"]
    tm_eff, n_row_tiles = plan["tm_eff"], plan["n_row_tiles"]
    rows_pad = plan["rows_pad"]
    cast_x, single_buf_w = plan["cast_x"], plan["single_buf_w"]
    dim_i_grid = tk * num_k

    # ---- pad operands (features to 128 multiples, rows to the tile grid) ----
    # TODO(synk): in a serving loop, pre-pad / pre-cast the weight copies once
    # outside this call and reuse them instead of re-materializing per step.
    def _pad2d(a, r, c):
        pr, pc = r - a.shape[0], c - a.shape[1]
        return jnp.pad(a, ((0, pr), (0, pc))) if (pr or pc) else a

    x_p = _pad2d(x2d, rows_pad, dim_m_pad)
    w1_p = _pad2d(w1.astype(mm_dtype), dim_m_pad, dim_i_grid)
    w2_p = _pad2d(w2.astype(mm_dtype), dim_i_grid, dim_m_pad)
    b1_p = _pad2d(b1.reshape(1, dim_i).astype(jnp.float32), 1, dim_i_grid)
    b2_p = _pad2d(b2.reshape(1, dim_m).astype(jnp.float32), 1, dim_m_pad)
    g_p = _pad2d(gamma.reshape(1, dim_m).astype(jnp.float32), 1, dim_m_pad)
    be_p = _pad2d(beta.reshape(1, dim_m).astype(jnp.float32), 1, dim_m_pad)

    kernel = functools.partial(_position_wise_kernel, dim_m=dim_m, eps=eps,
                               mm_dtype=mm_dtype, num_k=num_k, cast_x=cast_x)

    def _wspec(shape, index_map):
        # Constant-index weight blocks: request a single buffer when that is
        # what makes full residency fit (halves resident weight VMEM on v7x).
        if single_buf_w:
            try:
                return pl.BlockSpec(shape, index_map, pipeline_mode=pl.Buffered(1))
            except TypeError:
                pass
        return pl.BlockSpec(shape, index_map)

    in_specs = [
        pl.BlockSpec((tm_eff, dim_m_pad), lambda i, k: (i, 0)),    # x tile
        _wspec((dim_m_pad, tk), lambda i, k: (0, k)),              # W1 chunk
        _wspec((1, tk), lambda i, k: (0, k)),                      # b1 chunk
        _wspec((tk, dim_m_pad), lambda i, k: (k, 0)),              # W2 chunk
        pl.BlockSpec((1, dim_m_pad), lambda i, k: (0, 0)),         # b2
        pl.BlockSpec((1, dim_m_pad), lambda i, k: (0, 0)),         # gamma
        pl.BlockSpec((1, dim_m_pad), lambda i, k: (0, 0)),         # beta
    ]
    out_spec = pl.BlockSpec((tm_eff, dim_m_pad), lambda i, k: (i, 0))

    scratch_shapes = []
    if num_k > 1:
        scratch_shapes.append(pltpu.VMEM((tm_eff, dim_m_pad), jnp.float32))
        if cast_x:
            scratch_shapes.append(pltpu.VMEM((tm_eff, dim_m_pad), mm_dtype))

    footprint = (_weight_bytes(tk, 1 if single_buf_w else 2)
                 + _act_bytes(tm_eff, tk, num_k, cast_x))
    vmem_limit = int(min(vmem_budget, max(footprint + 4 * _MIB, 32 * _MIB)))

    # Weights are re-streamed once per row tile when chunked, once total when resident.
    weight_stream = 1 if num_k == 1 else n_row_tiles
    w_hbm_bytes = (w1_p.size + w2_p.size) * mb + b1_p.size * 4
    cost = pl.CostEstimate(
        flops=4 * rows_pad * dim_m_pad * dim_i_grid,
        transcendentals=rows_pad,
        bytes_accessed=int(x_p.size * xb + rows_pad * dim_m_pad * xb
                           + weight_stream * w_hbm_bytes
                           + (b2_p.size + g_p.size + be_p.size) * 4),
    )

    out = pl.pallas_call(
        kernel,
        out_shape=jax.ShapeDtypeStruct((rows_pad, dim_m_pad), x.dtype),
        grid_spec=pltpu.PrefetchScalarGridSpec(
            num_scalar_prefetch=0,
            grid=(n_row_tiles, num_k),
            in_specs=in_specs,
            out_specs=out_spec,
            scratch_shapes=scratch_shapes),
        compiler_params=pltpu.CompilerParams(
            dimension_semantics=("parallel", "arbitrary"),
            vmem_limit_bytes=vmem_limit),
        cost_estimate=cost,
    )(x_p, w1_p, b1_p, w2_p, b2_p, g_p, be_p)

    return out[:rows, :dim_m].reshape(orig_shape)


def _reference(x, w1, b1, w2, b2, gamma, beta, eps=1e-12):
    """Plain-JAX (f32) reference for correctness checking."""
    h = jnp.maximum(x @ w1 + b1, 0.0)
    y = h @ w2 + b2 + x
    mean = jnp.mean(y, axis=-1, keepdims=True)
    var = jnp.mean(jnp.square(y - mean), axis=-1, keepdims=True)
    return (y - mean) * lax.rsqrt(var + eps) * gamma + beta


if __name__ == "__main__":
    batch, seq, dim_m, dim_i = 2, 8, 32, 64
    key = jax.random.PRNGKey(0)
    kx, kw1, kb1, kw2, kb2, kw3, kb3, kw4 = jax.random.split(key, 8)

    x = jax.random.normal(kx, (batch, seq, dim_m), dtype=jnp.float32)

    bnd1, bnd2 = 1.0 / dim_m ** 0.5, 1.0 / dim_i ** 0.5
    w1 = jax.random.uniform(kw1, (dim_m, dim_i), minval=-bnd1, maxval=bnd1,
                            dtype=jnp.float32)
    b1 = jax.random.uniform(kb1, (dim_i,), minval=-bnd1, maxval=bnd1,
                            dtype=jnp.float32)
    w2 = jax.random.uniform(kw2, (dim_i, dim_m), minval=-bnd2, maxval=bnd2,
                            dtype=jnp.float32)
    b2 = jax.random.uniform(kb2, (dim_m,), minval=-bnd2, maxval=bnd2,
                            dtype=jnp.float32)
    gamma = jnp.ones((dim_m,), jnp.float32)
    beta = jnp.zeros((dim_m,), jnp.float32)

    ref = _reference(x, w1, b1, w2, b2, gamma, beta)

    # 1) weights-resident path, exact f32 matmuls.
    out_f32 = jax.block_until_ready(
        position_wise(x, w1, b1, w2, b2, gamma, beta, matmul_dtype=jnp.float32))
    assert out_f32.shape == x.shape
    assert jnp.allclose(out_f32, ref, atol=1e-5, rtol=1e-5), "f32 resident mismatch"

    # 2) weights-resident path, default bf16 matmuls (f32 accumulation / f32 LN).
    out_bf16 = jax.block_until_ready(
        position_wise(x, w1, b1, w2, b2, gamma, beta, matmul_dtype=jnp.bfloat16))
    assert out_bf16.shape == x.shape
    assert jnp.allclose(out_bf16, ref, atol=5e-2, rtol=5e-2), "bf16 resident mismatch"

    # 3) forced dim_i-chunked path (f32 accumulator + hoisted bf16 x-cast scratch).
    dim_i2 = 256
    bnd3 = 1.0 / dim_i2 ** 0.5
    w1c = jax.random.uniform(kw3, (dim_m, dim_i2), minval=-bnd1, maxval=bnd1,
                             dtype=jnp.float32)
    b1c = jax.random.uniform(kb3, (dim_i2,), minval=-bnd1, maxval=bnd1,
                             dtype=jnp.float32)
    w2c = jax.random.uniform(kw4, (dim_i2, dim_m), minval=-bnd3, maxval=bnd3,
                             dtype=jnp.float32)
    ref_c = _reference(x, w1c, b1c, w2c, b2, gamma, beta)
    out_c = jax.block_until_ready(
        position_wise(x, w1c, b1c, w2c, b2, gamma, beta,
                      matmul_dtype=jnp.bfloat16, tk_max=128, _force_chunked=True))
    assert out_c.shape == x.shape
    assert jnp.allclose(out_c, ref_c, atol=1e-1, rtol=1e-1), "bf16 chunked mismatch"

    print("KERNEL_OK")
</pallas_src>

<mosaic_0001>
module attributes {stable_mosaic.version = 11 : i64} {
  func.func @_position_wise_kernel(%arg0: i32, %arg1: i32, %arg2: memref<8x128xf32, #tpu.memory_space<vmem>>, %arg3: memref<128x128xf32, #tpu.memory_space<vmem>>, %arg4: memref<1x128xf32, #tpu.memory_space<vmem>>, %arg5: memref<128x128xf32, #tpu.memory_space<vmem>>, %arg6: memref<1x128xf32, #tpu.memory_space<vmem>>, %arg7: memref<1x128xf32, #tpu.memory_space<vmem>>, %arg8: memref<1x128xf32, #tpu.memory_space<vmem>>, %arg9: memref<8x128xf32, #tpu.memory_space<vmem>>) attributes {dimension_semantics = [#tpu.dimension_semantics<parallel>, #tpu.dimension_semantics<arbitrary>], iteration_bounds = array<i64: 2, 1>, scalar_prefetch = 0 : i64, scratch_operands = 0 : i64, tpu.core_type = #tpu.core_type<tc>, window_params = [{transform_indices = @transform_0, window_bounds = array<i64: 8, 128>}, {transform_indices = @transform_1, window_bounds = array<i64: 128, 128>}, {transform_indices = @transform_2, window_bounds = array<i64: 1, 128>}, {transform_indices = @transform_3, window_bounds = array<i64: 128, 128>}, {pipeline_mode = #tpu.pipeline_mode<synchronous>, transform_indices = @transform_4, window_bounds = array<i64: 1, 128>}, {pipeline_mode = #tpu.pipeline_mode<synchronous>, transform_indices = @transform_5, window_bounds = array<i64: 1, 128>}, {pipeline_mode = #tpu.pipeline_mode<synchronous>, transform_indices = @transform_6, window_bounds = array<i64: 1, 128>}, {transform_indices = @transform_7, window_bounds = array<i64: 8, 128>}]} {
    %c0 = arith.constant 0 : index
    %c0_0 = arith.constant 0 : index
    %0 = vector.load %arg2[%c0, %c0_0] : memref<8x128xf32, #tpu.memory_space<vmem>>, vector<8x128xf32>
    %c0_1 = arith.constant 0 : index
    %c0_2 = arith.constant 0 : index
    %1 = vector.load %arg3[%c0_1, %c0_2] : memref<128x128xf32, #tpu.memory_space<vmem>>, vector<128x128xf32>
    %cst = arith.constant dense<0.000000e+00> : vector<8x128xf32>
    %2 = tpu.matmul %0, %1, %cst {dimension_numbers = #tpu.dot_dimension_numbers<[1], [0], [0], [1], [0, 0, 1, 1], [], []>} : vector<8x128xf32>, vector<128x128xf32>, vector<8x128xf32> -> vector<8x128xf32>
    %c0_3 = arith.constant 0 : index
    %c0_4 = arith.constant 0 : index
    %3 = vector.load %arg4[%c0_3, %c0_4] : memref<1x128xf32, #tpu.memory_space<vmem>>, vector<1x128xf32>
    %4 = vector.broadcast %3 : vector<1x128xf32> to vector<8x128xf32>
    %5 = arith.addf %2, %4 : vector<8x128xf32>
    %cst_5 = arith.constant 0.000000e+00 : f32
    %6 = vector.broadcast %cst_5 : f32 to vector<8x128xf32>
    %7 = arith.maximumf %5, %6 : vector<8x128xf32>
    %c0_6 = arith.constant 0 : index
    %c0_7 = arith.constant 0 : index
    %8 = vector.load %arg5[%c0_6, %c0_7] : memref<128x128xf32, #tpu.memory_space<vmem>>, vector<128x128xf32>
    %cst_8 = arith.constant dense<0.000000e+00> : vector<8x128xf32>
    %9 = tpu.matmul %7, %8, %cst_8 {dimension_numbers = #tpu.dot_dimension_numbers<[1], [0], [0], [1], [0, 0, 1, 1], [], []>} : vector<8x128xf32>, vector<128x128xf32>, vector<8x128xf32> -> vector<8x128xf32>
    %c0_9 = arith.constant 0 : index
    %c0_10 = arith.constant 0 : index
    %10 = vector.load %arg6[%c0_9, %c0_10] : memref<1x128xf32, #tpu.memory_space<vmem>>, vector<1x128xf32>
    %11 = vector.broadcast %10 : vector<1x128xf32> to vector<8x128xf32>
    %12 = arith.addf %9, %11 : vector<8x128xf32>
    %13 = arith.addf %12, %0 : vector<8x128xf32>
    %c0_11 = arith.constant 0 : index
    %c0_12 = arith.constant 0 : index
    %14 = vector.load %arg7[%c0_11, %c0_12] : memref<1x128xf32, #tpu.memory_space<vmem>>, vector<1x128xf32>
    %c0_13 = arith.constant 0 : index
    %c0_14 = arith.constant 0 : index
    %15 = vector.load %arg8[%c0_13, %c0_14] : memref<1x128xf32, #tpu.memory_space<vmem>>, vector<1x128xf32>
    %16 = tpu.iota {dimensions = array<i32: 1>} : vector<8x128xi32>
    %c32_i32 = arith.constant 32 : i32
    %17 = vector.broadcast %c32_i32 : i32 to vector<8x128xi32>
    %18 = arith.cmpi slt, %16, %17 : vector<8x128xi32>
    %cst_15 = arith.constant 0.000000e+00 : f32
    %19 = vector.broadcast %cst_15 : f32 to vector<8x128xf32>
    %20 = arith.select %18, %13, %19 : vector<8x128xi1>, vector<8x128xf32>
    %cst_16 = arith.constant dense<0.000000e+00> : vector<8xf32>
    %21 = vector.multi_reduction <add>, %20, %cst_16 [1] : vector<8x128xf32> to vector<8xf32>
    %22 = vector.shape_cast %21 : vector<8xf32> to vector<8x1xf32>
    %cst_17 = arith.constant 3.125000e-02 : f32
    %23 = vector.broadcast %cst_17 : f32 to vector<8x1xf32>
    %24 = arith.mulf %22, %23 : vector<8x1xf32>
    %25 = vector.broadcast %24 : vector<8x1xf32> to vector<8x128xf32>
    %26 = arith.subf %20, %25 : vector<8x128xf32>
    %cst_18 = arith.constant 0.000000e+00 : f32
    %27 = vector.broadcast %cst_18 : f32 to vector<8x128xf32>
    %28 = arith.select %18, %26, %27 : vector<8x128xi1>, vector<8x128xf32>
    %29 = arith.mulf %28, %28 : vector<8x128xf32>
    %cst_19 = arith.constant dense<0.000000e+00> : vector<8xf32>
    %30 = vector.multi_reduction <add>, %29, %cst_19 [1] : vector<8x128xf32> to vector<8xf32>
    %31 = vector.shape_cast %30 : vector<8xf32> to vector<8x1xf32>
    %cst_20 = arith.constant 3.125000e-02 : f32
    %32 = vector.broadcast %cst_20 : f32 to vector<8x1xf32>
    %33 = arith.mulf %31, %32 : vector<8x1xf32>
    %cst_21 = arith.constant 9.99999996E-13 : f32
    %34 = vector.broadcast %cst_21 : f32 to vector<8x1xf32>
    %35 = arith.addf %33, %34 : vector<8x1xf32>
    %36 = math.rsqrt %35 : vector<8x1xf32>
    %37 = vector.broadcast %36 : vector<8x1xf32> to vector<8x128xf32>
    %38 = arith.mulf %28, %37 : vector<8x128xf32>
    %39 = vector.broadcast %14 : vector<1x128xf32> to vector<8x128xf32>
    %40 = arith.mulf %38, %39 : vector<8x128xf32>
    %41 = vector.broadcast %15 : vector<1x128xf32> to vector<8x128xf32>
    %42 = arith.addf %40, %41 : vector<8x128xf32>
    %c0_22 = arith.constant 0 : index
    %c0_23 = arith.constant 0 : index
    %43 = vector.load %arg9[%c0_22, %c0_23] : memref<8x128xf32, #tpu.memory_space<vmem>>, vector<8x128xf32>
    tpu.vector_store %arg9[%c0_22, %c0_23], %42 {strides = array<i32>} : memref<8x128xf32, #tpu.memory_space<vmem>>, vector<8x128xf32>,
    return
  }
  func.func @transform_0(%arg0: i32, %arg1: i32) -> (i32, i32) {
    %c0_i32 = arith.constant 0 : i32
    %c0_i32_0 = arith.constant 0 : i32
    return %arg0, %c0_i32 : i32, i32
  }
  func.func @transform_1(%arg0: i32, %arg1: i32) -> (i32, i32) {
    %c0_i32 = arith.constant 0 : i32
    %c0_i32_0 = arith.constant 0 : i32
    return %c0_i32, %arg1 : i32, i32
  }
  func.func @transform_2(%arg0: i32, %arg1: i32) -> (i32, i32) {
    %c0_i32 = arith.constant 0 : i32
    %c0_i32_0 = arith.constant 0 : i32
    return %c0_i32, %arg1 : i32, i32
  }
  func.func @transform_3(%arg0: i32, %arg1: i32) -> (i32, i32) {
    %c0_i32 = arith.constant 0 : i32
    %c0_i32_0 = arith.constant 0 : i32
    return %arg1, %c0_i32 : i32, i32
  }
  func.func @transform_4(%arg0: i32, %arg1: i32) -> (i32, i32) {
    %c0_i32 = arith.constant 0 : i32
    %c0_i32_0 = arith.constant 0 : i32
    %c0_i32_1 = arith.constant 0 : i32
    return %c0_i32, %c0_i32_0 : i32, i32
  }
  func.func @transform_5(%arg0: i32, %arg1: i32) -> (i32, i32) {
    %c0_i32 = arith.constant 0 : i32
    %c0_i32_0 = arith.constant 0 : i32
    %c0_i32_1 = arith.constant 0 : i32
    return %c0_i32, %c0_i32_0 : i32, i32
  }
  func.func @transform_6(%arg0: i32, %arg1: i32) -> (i32, i32) {
    %c0_i32 = arith.constant 0 : i32
    %c0_i32_0 = arith.constant 0 : i32
    %c0_i32_1 = arith.constant 0 : i32
    return %c0_i32, %c0_i32_0 : i32, i32
  }
  func.func @transform_7(%arg0: i32, %arg1: i32) -> (i32, i32) {
    %c0_i32 = arith.constant 0 : i32
    %c0_i32_0 = arith.constant 0 : i32
    return %arg0, %c0_i32 : i32, i32
  }
}

</mosaic_0001>

<llo_original>
// kernel: tpu_custom_call.1
$region0: #{tpu_custom_call.1}
  #allocation0 [shape = 'u32[]', space=smem, size = 0x4, offset = 0x4, fixed_abs, tag = 'smem constant byte address 0x4 - core index']
  #allocation1 [shape = 'u32[72,128]{1,0:T(1,128)}', space=vmem, size = 0x9000, scoped, tag = 'internal scratch']
  %s0 = inlined_call_operand.hbm [shape: f32[16,128], index: 0, kind: input, shape index: {}]
  %s1 = inlined_call_operand.hbm [shape: f32[128,128], index: 1, kind: input, shape index: {}]
  %s2 = inlined_call_operand.vmem [shape: f32[1,128], index: 2, kind: input, shape index: {}]
  %s3 = inlined_call_operand.hbm [shape: f32[128,128], index: 3, kind: input, shape index: {}]
  %s4 = inlined_call_operand.vmem [shape: f32[1,128], index: 4, kind: input, shape index: {}]
  %s5 = inlined_call_operand.vmem [shape: f32[1,128], index: 5, kind: input, shape index: {}]
  %s6 = inlined_call_operand.vmem [shape: f32[1,128], index: 6, kind: input, shape index: {}]
  %s7 = inlined_call_operand.hbm [shape: f32[16,128], index: 7, kind: output, shape index: {}]
  %s8 = sld [smem:[#allocation0]]
  $region73: #{tpu_custom_call.1} parent=0
    _
  %s10 = ssub.s32 1, %s8
  %s11 = scalar_select 0, %s10, %s8
  $region1: #{tpu_custom_call.1} parent=0
    #allocation2 [shape = 'u8[8192]{0}', space=vmem, size = 0x2000, scoped, tag = 'input window, operand 0']
    #allocation3 [shape = 's32[2]{0}', space=sflag, size = 0x8, scoped, tag = 'scoped memory for tpu_custom_call.1']
    #allocation4 [shape = 's32[2]{0}', space=sflag, size = 0x8, scoped, tag = 'scoped memory for tpu_custom_call.1']
    #allocation5 [shape = 'u8[65536]{0}', space=vmem, size = 0x10000, scoped, tag = 'input window, operand 1, single buffered']
    #allocation6 [shape = 's32[1]{0}', space=sflag, size = 0x4, scoped, tag = 'scoped memory for tpu_custom_call.1']
    #allocation7 [shape = 'u8[65536]{0}', space=vmem, size = 0x10000, scoped, tag = 'input window, operand 3, single buffered']
    #allocation8 [shape = 'u8[8192]{0}', space=vmem, size = 0x2000, scoped, tag = 'output window, operand 0']
    %12 = vsyncpa [#allocation3], 0
    %s13 = scalar_lea.sflag [#allocation3], 1
    %14 = vsyncpa %s13, 0
    %15 = vsyncpa [#allocation6], 0
    %16 = vsyncpa [#allocation4], 0
    %s17 = scalar_lea.sflag [#allocation4], 1
    %18 = vsyncpa %s17, 0
    loop: start=0, step=1, limit=4
    $region2: #{tpu_custom_call.1} parent=1 // loop_pre_header
      _
    $region3: #{tpu_custom_call.1} parent=1 // loop_header
      %s20 = sphi 0, %s24
      %p21 = scmp.ge.s32.totalorder %s20, 4
      %s27 = sphi 0, %s39
      %s28 = sphi 0, %s35
      %s29 = sphi 0, %s27
      %s30 = sphi 0, %s28
      %s31 = sphi 0, %s29
      %s32 = sphi 0, %s30
      %s42 = sphi 0, %s44
      %s45 = sphi 0, %s42
      %s46 = sphi 0, %s45
      %s62 = sphi 0, %s46
      %s68 = sphi 0, %s70
      %s71 = sphi 0, %s68
      %s72 = sphi 0, %s71
      %s88 = sphi 0, %s72
      %s94 = sphi 0, %s96
      %s97 = sphi 0, %s94
      %s98 = sphi 0, %s97
      %s114 = sphi 0, %s98
      %s120 = sphi 0, %s122
      %s123 = sphi 0, %s120
      %s124 = sphi 0, %s123
      %s140 = sphi 0, %s124
      %s144 = sphi 0, %s144
      %s146 = sphi 0, %s144
      %s147 = sphi 0, %s146
      %s161 = sphi 0, %s147
      %s165 = sphi 0, %s165
      %s167 = sphi 0, %s165
      %s168 = sphi 0, %s167
      %s182 = sphi 0, %s168
      %s186 = sphi 0, %s186
      %s188 = sphi 0, %s186
      %s189 = sphi 0, %s188
      %s203 = sphi 0, %s189
      %s209 = sphi 0, %s211
      %s212 = sphi 0, %s209
      %s213 = sphi 0, %s212
      %s229 = sphi 0, %s213
    $region4: #{tpu_custom_call.1} parent=1 // loop_header_branch
      %23 = sbr.rel (%p21) target = $region8
    $region5: #{tpu_custom_call.1} parent=1 // loop_body
      %s25 = ssub.s32 %s20, 1
      %s26 = ssub.s32 %s20, 2
      %s33 = sadd.s32 1, %s28
      %p34 = scmp.ge.s32.totalorder %s33, 1
      %s35 = scalar_select %p34, 0, %s33
      %s36 = sadd.s32 1, %s27
      %s37 = scalar_select %p34, %s36, %s27
      %p38 = scmp.ge.s32.totalorder %s37, 2
      %s39 = scalar_select %p38, 0, %s37
      %s40 = ssub.s32 %s27, %s39
      %p41 = scmp.eq.s32.totalorder %s40, 0
      %s43 = sadd.s32 %s42, 1
      %s44 = scalar_select %p41, %s42, %s43
      %p47 = pneg %p41
      %p48 = scmp.eq.s32.totalorder %s20, 1
      %p49 = por %p47, %p48
      %p50 = scmp.ne.s32.totalorder %s42, %s45
      %p51 = scmp.eq.s32.totalorder %s20, 0
      %p52 = por %p50, %p51
      %p53 = scmp.ne.s32.totalorder %s42, %s45
      %p54 = scmp.eq.s32.totalorder %s25, 1
      %p55 = por %p53, %p54
      %p56 = scmp.ne.s32.totalorder %s45, %s46
      %p57 = scmp.eq.s32.totalorder %s25, 0
      %p58 = por %p56, %p57
      %p59 = scmp.ne.s32.totalorder %s45, %s46
      %p60 = scmp.eq.s32.totalorder %s26, 1
      %p61 = por %p59, %p60
      %p63 = scmp.ne.s32.totalorder %s46, %s62
      %p64 = scmp.eq.s32.totalorder %s26, 0
      %p65 = por %p63, %p64
      %s66 = ssub.s32 %s28, %s35
      %p67 = scmp.eq.s32.totalorder %s66, 0
      %s69 = sadd.s32 %s68, 1
      %s70 = scalar_select %p67, %s68, %s69
      %p73 = pneg %p67
      %p74 = scmp.eq.s32.totalorder %s20, 1
      %p75 = por %p73, %p74
      %p76 = scmp.ne.s32.totalorder %s68, %s71
      %p77 = scmp.eq.s32.totalorder %s20, 0
      %p78 = por %p76, %p77
      %p79 = scmp.ne.s32.totalorder %s68, %s71
      %p80 = scmp.eq.s32.totalorder %s25, 1
      %p81 = por %p79, %p80
      %p82 = scmp.ne.s32.totalorder %s71, %s72
      %p83 = scmp.eq.s32.totalorder %s25, 0
      %p84 = por %p82, %p83
      %p85 = scmp.ne.s32.totalorder %s71, %s72
      %p86 = scmp.eq.s32.totalorder %s26, 1
      %p87 = por %p85, %p86
      %p89 = scmp.ne.s32.totalorder %s72, %s88
      %p90 = scmp.eq.s32.totalorder %s26, 0
      %p91 = por %p89, %p90
      %s92 = ssub.s32 %s28, %s35
      %p93 = scmp.eq.s32.totalorder %s92, 0
      %s95 = sadd.s32 %s94, 1
      %s96 = scalar_select %p93, %s94, %s95
      %p99 = pneg %p93
      %p100 = scmp.eq.s32.totalorder %s20, 1
      %p101 = por %p99, %p100
      %p102 = scmp.ne.s32.totalorder %s94, %s97
      %p103 = scmp.eq.s32.totalorder %s20, 0
      %p104 = por %p102, %p103
      %p105 = scmp.ne.s32.totalorder %s94, %s97
      %p106 = scmp.eq.s32.totalorder %s25, 1
      %p107 = por %p105, %p106
      %p108 = scmp.ne.s32.totalorder %s97, %s98
      %p109 = scmp.eq.s32.totalorder %s25, 0
      %p110 = por %p108, %p109
      %p111 = scmp.ne.s32.totalorder %s97, %s98
      %p112 = scmp.eq.s32.totalorder %s26, 1
      %p113 = por %p111, %p112
      %p115 = scmp.ne.s32.totalorder %s98, %s114
      %p116 = scmp.eq.s32.totalorder %s26, 0
      %p117 = por %p115, %p116
      %s118 = ssub.s32 %s28, %s35
      %p119 = scmp.eq.s32.totalorder %s118, 0
      %s121 = sadd.s32 %s120, 1
      %s122 = scalar_select %p119, %s120, %s121
      %p125 = pneg %p119
      %p126 = scmp.eq.s32.totalorder %s20, 1
      %p127 = por %p125, %p126
      %p128 = scmp.ne.s32.totalorder %s120, %s123
      %p129 = scmp.eq.s32.totalorder %s20, 0
      %p130 = por %p128, %p129
      %p131 = scmp.ne.s32.totalorder %s120, %s123
      %p132 = scmp.eq.s32.totalorder %s25, 1
      %p133 = por %p131, %p132
      %p134 = scmp.ne.s32.totalorder %s123, %s124
      %p135 = scmp.eq.s32.totalorder %s25, 0
      %p136 = por %p134, %p135
      %p137 = scmp.ne.s32.totalorder %s123, %s124
      %p138 = scmp.eq.s32.totalorder %s26, 1
      %p139 = por %p137, %p138
      %p141 = scmp.ne.s32.totalorder %s124, %s140
      %p142 = scmp.eq.s32.totalorder %s26, 0
      %p143 = por %p141, %p142
      %s145 = sadd.s32 %s144, 1
      %p148 = scmp.eq.s32.totalorder %s20, 1
      %p149 = scmp.ne.s32.totalorder %s144, %s146
      %p150 = scmp.eq.s32.totalorder %s20, 0
      %p151 = por %p149, %p150
      %p152 = scmp.ne.s32.totalorder %s144, %s146
      %p153 = scmp.eq.s32.totalorder %s25, 1
      %p154 = por %p152, %p153
      %p155 = scmp.ne.s32.totalorder %s146, %s147
      %p156 = scmp.eq.s32.totalorder %s25, 0
      %p157 = por %p155, %p156
      %p158 = scmp.ne.s32.totalorder %s146, %s147
      %p159 = scmp.eq.s32.totalorder %s26, 1
      %p160 = por %p158, %p159
      %p162 = scmp.ne.s32.totalorder %s147, %s161
      %p163 = scmp.eq.s32.totalorder %s26, 0
      %p164 = por %p162, %p163
      %s166 = sadd.s32 %s165, 1
      %p169 = scmp.eq.s32.totalorder %s20, 1
      %p170 = scmp.ne.s32.totalorder %s165, %s167
      %p171 = scmp.eq.s32.totalorder %s20, 0
      %p172 = por %p170, %p171
      %p173 = scmp.ne.s32.totalorder %s165, %s167
      %p174 = scmp.eq.s32.totalorder %s25, 1
      %p175 = por %p173, %p174
      %p176 = scmp.ne.s32.totalorder %s167, %s168
      %p177 = scmp.eq.s32.totalorder %s25, 0
      %p178 = por %p176, %p177
      %p179 = scmp.ne.s32.totalorder %s167, %s168
      %p180 = scmp.eq.s32.totalorder %s26, 1
      %p181 = por %p179, %p180
      %p183 = scmp.ne.s32.totalorder %s168, %s182
      %p184 = scmp.eq.s32.totalorder %s26, 0
      %p185 = por %p183, %p184
      %s187 = sadd.s32 %s186, 1
      %p190 = scmp.eq.s32.totalorder %s20, 1
      %p191 = scmp.ne.s32.totalorder %s186, %s188
      %p192 = scmp.eq.s32.totalorder %s20, 0
      %p193 = por %p191, %p192
      %p194 = scmp.ne.s32.totalorder %s186, %s188
      %p195 = scmp.eq.s32.totalorder %s25, 1
      %p196 = por %p194, %p195
      %p197 = scmp.ne.s32.totalorder %s188, %s189
      %p198 = scmp.eq.s32.totalorder %s25, 0
      %p199 = por %p197, %p198
      %p200 = scmp.ne.s32.totalorder %s188, %s189
      %p201 = scmp.eq.s32.totalorder %s26, 1
      %p202 = por %p200, %p201
      %p204 = scmp.ne.s32.totalorder %s189, %s203
      %p205 = scmp.eq.s32.totalorder %s26, 0
      %p206 = por %p204, %p205
      %s207 = ssub.s32 %s27, %s39
      %p208 = scmp.eq.s32.totalorder %s207, 0
      %s210 = sadd.s32 %s209, 1
      %s211 = scalar_select %p208, %s209, %s210
      %p214 = pneg %p208
      %p215 = scmp.eq.s32.totalorder %s20, 1
      %p216 = por %p214, %p215
      %p217 = scmp.ne.s32.totalorder %s209, %s212
      %p218 = scmp.eq.s32.totalorder %s20, 0
      %p219 = por %p217, %p218
      %p220 = scmp.ne.s32.totalorder %s209, %s212
      %p221 = scmp.eq.s32.totalorder %s25, 1
      %p222 = por %p220, %p221
      %p223 = scmp.ne.s32.totalorder %s212, %s213
      %p224 = scmp.eq.s32.totalorder %s25, 0
      %p225 = por %p223, %p224
      %p226 = scmp.ne.s32.totalorder %s212, %s213
      %p227 = scmp.eq.s32.totalorder %s26, 1
      %p228 = por %p226, %p227
      %p230 = scmp.ne.s32.totalorder %s213, %s229
      %p231 = scmp.eq.s32.totalorder %s26, 0
      %p232 = por %p230, %p231
      %p233 = scmp.le.s32.totalorder 1, %s20
      %p234 = scmp.lt.s32.totalorder %s20, 3
      %p235 = pnand %p233, %p234
      %p236 = pneg %p235
      // Predicated region
      $region9: #{tpu_custom_call.1} parent=5 // pred_check
        _
      $region10: #{tpu_custom_call.1} parent=5 // pred_check_branch
        %238 = sbr.rel (%p235) target = $region12
      $region11: #{tpu_custom_call.1} parent=5 // pred_region
        %s239 = ssub.s32 %s20, 1
        // Predicated region
        $region13: #{tpu_custom_call.1} parent=11 // pred_check
          %p240 = pneg %p84
        $region14: #{tpu_custom_call.1} parent=11 // pred_check_branch
          %242 = sbr.rel (%p240) target = $region16
        $region15: #{tpu_custom_call.1} parent=11 // pred_region
          %244 = vsyncadd [#allocation6], 0
          %s245 = smul.addr %s30, 8
          %s246 = scalar_lea.hbm %s1, %s245
          %s247 = sshll.u32 %s246, 4
          %s248 = int_to_ptr.hbm [resolvable:$true] %s247
          %s249 = sshll.u32 [#allocation5], 4
          %s250 = int_to_ptr.vmem [resolvable:$true] %s249
          %255 = dma.hbm_to_vmem [thread:$0]  %s248, 2048, %s250, [#allocation6], 128, 128, 8
        $region16: #{tpu_custom_call.1} parent=11 // pred_fallthru
          _
        // Predicated region
        $region17: #{tpu_custom_call.1} parent=11 // pred_check
          %p256 = pneg %p110
        $region18: #{tpu_custom_call.1} parent=11 // pred_check_branch
          %258 = sbr.rel (%p256) target = $region20
        $region19: #{tpu_custom_call.1} parent=11 // pred_region
          %p259 = scmp.lt.s32.totalorder %s30, 0
          %s260 = scalar_select %p259, %s30, 0
          %s261 = scalar_lea.vmem %s2, %s260
        $region20: #{tpu_custom_call.1} parent=11 // pred_fallthru
          _
        // Predicated region
        $region21: #{tpu_custom_call.1} parent=11 // pred_check
          %p262 = pneg %p136
        $region22: #{tpu_custom_call.1} parent=11 // pred_check_branch
          %264 = sbr.rel (%p262) target = $region24
        $region23: #{tpu_custom_call.1} parent=11 // pred_region
          %s265 = smul.u32 16, %s30
          %267 = vsyncadd [#allocation6], 0
          %s268 = smul.addr %s265, 8
          %s269 = scalar_lea.hbm %s3, %s268
          %s270 = sshll.u32 %s269, 4
          %s271 = int_to_ptr.hbm [resolvable:$true] %s270
          %s272 = sshll.u32 [#allocation7], 4
          %s273 = int_to_ptr.vmem [resolvable:$true] %s272
          %278 = dma.hbm_to_vmem [thread:$0]  %s271, 2048, %s273, [#allocation6], 128, 128, 8
        $region24: #{tpu_custom_call.1} parent=11 // pred_fallthru
          _
        // Predicated region
        $region25: #{tpu_custom_call.1} parent=11 // pred_check
          %p279 = pneg %p157
        $region26: #{tpu_custom_call.1} parent=11 // pred_check_branch
          %281 = sbr.rel (%p279) target = $region28
        $region27: #{tpu_custom_call.1} parent=11 // pred_region
          _
        $region28: #{tpu_custom_call.1} parent=11 // pred_fallthru
          _
        // Predicated region
        $region29: #{tpu_custom_call.1} parent=11 // pred_check
          %p282 = pneg %p178
        $region30: #{tpu_custom_call.1} parent=11 // pred_check_branch
          %284 = sbr.rel (%p282) target = $region32
        $region31: #{tpu_custom_call.1} parent=11 // pred_region
          _
        $region32: #{tpu_custom_call.1} parent=11 // pred_fallthru
          _
        // Predicated region
        $region33: #{tpu_custom_call.1} parent=11 // pred_check
          %p285 = pneg %p199
        $region34: #{tpu_custom_call.1} parent=11 // pred_check_branch
          %287 = sbr.rel (%p285) target = $region36
        $region35: #{tpu_custom_call.1} parent=11 // pred_region
          _
        $region36: #{tpu_custom_call.1} parent=11 // pred_fallthru
          _
      $region12: #{tpu_custom_call.1} parent=5 // pred_fallthru
        _
      %p288 = scmp.lt.s32.totalorder %s20, 2
      // Predicated region
      $region37: #{tpu_custom_call.1} parent=5 // pred_check
        %p289 = pneg %p288
      $region38: #{tpu_custom_call.1} parent=5 // pred_check_branch
        %291 = sbr.rel (%p289) target = $region40
      $region39: #{tpu_custom_call.1} parent=5 // pred_region
        // Predicated region
        $region41: #{tpu_custom_call.1} parent=39 // pred_check
          %p292 = pneg %p52
        $region42: #{tpu_custom_call.1} parent=39 // pred_check_branch
          %294 = sbr.rel (%p292) target = $region44
        $region43: #{tpu_custom_call.1} parent=39 // pred_region
          %s295 = sand.u32 %s42, 1
          %s296 = scalar_lea.sflag [#allocation3], %s295
          %s297 = sand.u32 %s42, 1
          %s298 = smul.addr %s297, 8
          %s299 = scalar_lea.vmem [#allocation2], %s298
          %301 = vsyncadd %s296, 0
          %s302 = smul.addr %s27, 8
          %s303 = scalar_lea.hbm %s0, %s302
          %s305 = sshll.u32 %s303, 4
          %s306 = int_to_ptr.hbm [resolvable:$true] %s305
          %s307 = sshll.u32 %s299, 4
          %s308 = int_to_ptr.vmem [resolvable:$true] %s307
          %310 = dma.hbm_to_vmem [thread:$0]  %s306, 128, %s308, %s296
        $region44: #{tpu_custom_call.1} parent=39 // pred_fallthru
          _
      $region40: #{tpu_custom_call.1} parent=5 // pred_fallthru
        _
      %p311 = scmp.le.s32.totalorder 1, %s20
      %p312 = scmp.lt.s32.totalorder %s20, 3
      %p313 = pnand %p311, %p312
      %p314 = pneg %p313
      // Predicated region
      $region45: #{tpu_custom_call.1} parent=5 // pred_check
        _
      $region46: #{tpu_custom_call.1} parent=5 // pred_check_branch
        %316 = sbr.rel (%p313) target = $region48
      $region47: #{tpu_custom_call.1} parent=5 // pred_region
        %s317 = ssub.s32 %s20, 1
        %s318 = sand.u32 %s45, 1
        %s319 = scalar_lea.sflag [#allocation3], %s318
        %s320 = sand.u32 %s45, 1
        %s321 = smul.addr %s320, 8
        %s322 = scalar_lea.vmem [#allocation2], %s321
        // Predicated region
        $region49: #{tpu_custom_call.1} parent=47 // pred_check
          %p323 = pneg %p58
        $region50: #{tpu_custom_call.1} parent=47 // pred_check_branch
          %325 = sbr.rel (%p323) target = $region52
        $region51: #{tpu_custom_call.1} parent=47 // pred_region
          %327 = dma.done %s319, 128
        $region52: #{tpu_custom_call.1} parent=47 // pred_fallthru
          _
        // Predicated region
        $region53: #{tpu_custom_call.1} parent=47 // pred_check
          %p328 = pneg %p84
        $region54: #{tpu_custom_call.1} parent=47 // pred_check_branch
          %330 = sbr.rel (%p328) target = $region56
        $region55: #{tpu_custom_call.1} parent=47 // pred_region
          %332 = dma.done [#allocation6], 2048
        $region56: #{tpu_custom_call.1} parent=47 // pred_fallthru
          _
        // Predicated region
        $region57: #{tpu_custom_call.1} parent=47 // pred_check
          %p333 = pneg %p136
        $region58: #{tpu_custom_call.1} parent=47 // pred_check_branch
          %335 = sbr.rel (%p333) target = $region60
        $region59: #{tpu_custom_call.1} parent=47 // pred_region
          %337 = dma.done [#allocation6], 2048
        $region60: #{tpu_custom_call.1} parent=47 // pred_fallthru
          _
        %s338 = sand.u32 %s45, 1
        %s339 = scalar_lea.sflag [#allocation3], %s338
        %s340 = sand.u32 %s45, 1
        %s341 = smul.addr %s340, 8
        %s342 = scalar_lea.vmem [#allocation2], %s341
        %p343 = pneg %p58
        %p344 = pneg %p55
        %p345 = pneg %p84
        %p346 = pneg %p81
        %p347 = scmp.lt.s32.totalorder %s30, 0
        %s348 = scalar_select %p347, %s30, 0
        %s349 = scalar_lea.vmem %s2, %s348
        %p350 = pneg %p110
        %p351 = pneg %p107
        %p352 = pneg %p136
        %p353 = pneg %p133
        %p354 = pneg %p157
        %p355 = pneg %p154
        %p356 = pneg %p178
        %p357 = pneg %p175
        %p358 = pneg %p199
        %p359 = pneg %p196
        %p360 = pneg %p225
        %p361 = pneg %p222
        %s362 = sand.u32 %s212, 1
        %s363 = scalar_lea.sflag [#allocation4], %s362
        %s364 = sand.u32 %s212, 1
        %s365 = smul.addr %s364, 8
        %s366 = scalar_lea.vmem [#allocation8], %s365
        %p367 = scmp.lt.s32.totalorder %s30, 0
        %s368 = scalar_select %p367, %s30, 0
        %s369 = scalar_lea.vmem %s2, %s368
        %s370 = smul.u32 16, %s30
        %v371 = vld [vmem:[%s322] sm:$0xff]
        %v372 = vld [vmem:[#allocation5] sm:$0xff]
        %v373 = vld [vmem:[#allocation5 + $0x8] sm:$0xff]
        %v374 = vld [vmem:[#allocation5 + $0x10] sm:$0xff]
        %v375 = vld [vmem:[#allocation5 + $0x18] sm:$0xff]
        %v376 = vld [vmem:[#allocation5 + $0x20] sm:$0xff]
        %v377 = vld [vmem:[#allocation5 + $0x28] sm:$0xff]
        %v378 = vld [vmem:[#allocation5 + $0x30] sm:$0xff]
        %v379 = vld [vmem:[#allocation5 + $0x38] sm:$0xff]
        %v380 = vld [vmem:[#allocation5 + $0x40] sm:$0xff]
        %v381 = vld [vmem:[#allocation5 + $0x48] sm:$0xff]
        %v382 = vld [vmem:[#allocation5 + $0x50] sm:$0xff]
        %v383 = vld [vmem:[#allocation5 + $0x58] sm:$0xff]
        %v384 = vld [vmem:[#allocation5 + $0x60] sm:$0xff]
        %v385 = vld [vmem:[#allocation5 + $0x68] sm:$0xff]
        %v386 = vld [vmem:[#allocation5 + $0x70] sm:$0xff]
        %v387 = vld [vmem:[#allocation5 + $0x78] sm:$0xff]
        %v388 = vld [vmem:[%s369] sm:$0x1]
        %v390 = vperm.slane %v388, 0
        %392 = vmatpush.msra.mxu0 %v387
        %393 = vmatpush.msra.mxu0 %v386
        %394 = vmatpush.msra.mxu0 %v385
        %395 = vmatpush.msra.mxu0 %v384
        %396 = vmatpush.msra.mxu0 %v383
        %397 = vmatpush.msra.mxu0 %v382
        %398 = vmatpush.msra.mxu0 %v381
        %399 = vmatpush.msra.mxu0 %v380
        %400 = vmatpush.msra.mxu0 %v379
        %401 = vmatpush.msra.mxu0 %v378
        %402 = vmatpush.msra.mxu0 %v377
        %403 = vmatpush.msra.mxu0 %v376
        %404 = vmatpush.msra.mxu0 %v375
        %405 = vmatpush.msra.mxu0 %v374
        %406 = vmatpush.msra.mxu0 %v373
        %407 = vmatpush.msra.mxu0 %v372
        %408 = vmatmul.f32.gmra.mxu0 %v371
        %v409 = vpop.f32.mrf.mxu0
        %v410 = vadd.f32 %v390, %v409
        %411 = vdwg.mxu0
        %v412 = vmax.f32 %v410, 0.0
        %v413 = vld [vmem:[#allocation7] sm:$0xff]
        %v414 = vld [vmem:[#allocation7 + $0x8] sm:$0xff]
        %v415 = vld [vmem:[#allocation7 + $0x10] sm:$0xff]
        %v416 = vld [vmem:[#allocation7 + $0x18] sm:$0xff]
        %v417 = vld [vmem:[#allocation7 + $0x20] sm:$0xff]
        %v418 = vld [vmem:[#allocation7 + $0x28] sm:$0xff]
        %v419 = vld [vmem:[#allocation7 + $0x30] sm:$0xff]
        %v420 = vld [vmem:[#allocation7 + $0x38] sm:$0xff]
        %v421 = vld [vmem:[#allocation7 + $0x40] sm:$0xff]
        %v422 = vld [vmem:[#allocation7 + $0x48] sm:$0xff]
        %v423 = vld [vmem:[#allocation7 + $0x50] sm:$0xff]
        %v424 = vld [vmem:[#allocation7 + $0x58] sm:$0xff]
        %v425 = vld [vmem:[#allocation7 + $0x60] sm:$0xff]
        %v426 = vld [vmem:[#allocation7 + $0x68] sm:$0xff]
        %v427 = vld [vmem:[#allocation7 + $0x70] sm:$0xff]
        %v428 = vld [vmem:[#allocation7 + $0x78] sm:$0xff]
        %v429 = vld [vmem:[%s4] sm:$0x1]
        %v431 = vperm.slane %v429, 0
        %433 = vmatpush.msra.mxu0 %v428
        %434 = vmatpush.msra.mxu0 %v427
        %435 = vmatpush.msra.mxu0 %v426
        %436 = vmatpush.msra.mxu0 %v425
        %437 = vmatpush.msra.mxu0 %v424
        %438 = vmatpush.msra.mxu0 %v423
        %439 = vmatpush.msra.mxu0 %v422
        %440 = vmatpush.msra.mxu0 %v421
        %441 = vmatpush.msra.mxu0 %v420
        %442 = vmatpush.msra.mxu0 %v419
        %443 = vmatpush.msra.mxu0 %v418
        %444 = vmatpush.msra.mxu0 %v417
        %445 = vmatpush.msra.mxu0 %v416
        %446 = vmatpush.msra.mxu0 %v415
        %447 = vmatpush.msra.mxu0 %v414
        %448 = vmatpush.msra.mxu0 %v413
        %449 = vmatmul.f32.gmra.mxu0 %v412
        %v450 = vpop.f32.mrf.mxu0
        %v451 = vadd.f32 %v431, %v450
        %452 = vdwg.mxu0
        %v453 = vadd.f32 %v451, %v371
        %v454 = vld [vmem:[%s5] sm:$0x1]
        %v455 = vld [vmem:[%s6] sm:$0x1]
        %v456 = vlaneseq
        %v457 = vand.u32 %v456, 127
        %vm458 = vcmp.lt.s32.totalorder %v457, 32
        %v459 = vsel %vm458, %v453, 0.0
        %460 = vadd.xlane.f32.xlu0 %v459
        %v461 = vpop.xlane.xlu0 %460
        %v462 = vmul.f32 %v461, 0.03125
        %v463 = vsub.f32 %v459, %v462
        %v464 = vsel %vm458, %v463, 0.0
        %v465 = vmul.f32 %v464, %v464
        %466 = vadd.xlane.f32.xlu0 %v465
        %v467 = vpop.xlane.xlu0 %466
        %v468 = vmul.f32 %v467, 0.03125
        %v469 = vadd.f32 %v468, 1e-12
        %v470 = vrsqrt.pop %v469
        %v471 = vmul.f32 %v470, %v469
        %v472 = vmul.f32 %v471, %v470
        %v473 = vmul.f32 0.5, %v472
        %v474 = vsub.f32 1.5, %v473
        %v475 = vmul.f32 %v470, %v474
        %vm476 = vweird.f32 %v469
        %vm477 = vweird.f32 %v470
        %vm478 = vmor %vm476, %vm477
        %v479 = vsel %vm478, %v470, %v475
        %v480 = vmul.f32 %v464, %v479
        %v482 = vperm.slane %v454, 0
        %v484 = vmul.f32 %v480, %v482
        %v486 = vperm.slane %v455, 0
        %v488 = vadd.f32 %v484, %v486
        %489 = vst [vmem:[%s366] sm:$0xff] %v488
        %s490 = sand.u32 %s212, 1
        %s491 = scalar_lea.sflag [#allocation4], %s490
        %s492 = sand.u32 %s212, 1
        %s493 = smul.addr %s492, 8
        %s494 = scalar_lea.vmem [#allocation8], %s493
        // Predicated region
        $region61: #{tpu_custom_call.1} parent=47 // pred_check
          %p495 = pneg %p222
        $region62: #{tpu_custom_call.1} parent=47 // pred_check_branch
          %497 = sbr.rel (%p495) target = $region64
        $region63: #{tpu_custom_call.1} parent=47 // pred_region
          %499 = vsyncadd %s491, 0
          %s500 = smul.addr %s29, 8
          %s501 = scalar_lea.hbm %s7, %s500
          %s503 = sshll.u32 %s494, 4
          %s504 = int_to_ptr.vmem [resolvable:$true] %s503
          %s505 = sshll.u32 %s501, 4
          %s506 = int_to_ptr.hbm [resolvable:$true] %s505
          %508 = dma.vmem_to_hbm [thread:$0]  %s504, 128, %s506, %s491
        $region64: #{tpu_custom_call.1} parent=47 // pred_fallthru
          _
      $region48: #{tpu_custom_call.1} parent=5 // pred_fallthru
        _
      %p509 = scmp.le.s32.totalorder 2, %s20
      // Predicated region
      $region65: #{tpu_custom_call.1} parent=5 // pred_check
        %p510 = pneg %p509
      $region66: #{tpu_custom_call.1} parent=5 // pred_check_branch
        %512 = sbr.rel (%p510) target = $region68
      $region67: #{tpu_custom_call.1} parent=5 // pred_region
        %s513 = ssub.s32 %s20, 2
        // Predicated region
        $region69: #{tpu_custom_call.1} parent=67 // pred_check
          %p514 = pneg %p228
        $region70: #{tpu_custom_call.1} parent=67 // pred_check_branch
          %516 = sbr.rel (%p514) target = $region72
        $region71: #{tpu_custom_call.1} parent=67 // pred_region
          %s517 = sand.u32 %s213, 1
          %s518 = scalar_lea.sflag [#allocation4], %s517
          %s519 = sand.u32 %s213, 1
          %s520 = smul.addr %s519, 8
          %s521 = scalar_lea.vmem [#allocation8], %s520
          %523 = dma.done %s518, 128
        $region72: #{tpu_custom_call.1} parent=67 // pred_fallthru
          _
      $region68: #{tpu_custom_call.1} parent=5 // pred_fallthru
        _
    $region6: #{tpu_custom_call.1} parent=1 // loop_footer
      %s24 = sadd.s32 1, %s20
    $region7: #{tpu_custom_call.1} parent=1 // loop_footer_branch
      %19 = sbr.rel target = $region3
    $region8: #{tpu_custom_call.1} parent=1 // loop_exit
      _
    %524 = vsyncpa [#allocation3], 1
    %s525 = scalar_lea.sflag [#allocation3], 1
    %526 = vsyncpa %s525, 1
    %527 = vsyncpa [#allocation6], 1
    %528 = vsyncpa [#allocation4], 1
    %s529 = scalar_lea.sflag [#allocation4], 1
    %530 = vsyncpa %s529, 1

</llo_original>
